<compile_context>
chip_gen: v5e
topology: v5e:2x2
jax: 0.10.0
libtpu: 0.0.40
codegen_flags: <defaults>
</compile_context>

<pallas_src>
import jax
import jax.numpy as jnp
from jax import lax
from jax.experimental import pallas as pl
from jax.experimental.pallas import tpu as pltpu


def policy_net_kernel(x_ref, w1_ref, b1_ref, w2_ref, b2_ref, out_ref):
    # x_ref  : [tile_b, state_dim]   (native PyTorch activation layout)
    # w1_ref : [hidden, state_dim]   (PyTorch nn.Linear layout, [out, in])
    # b1_ref : [hidden, 1]
    # w2_ref : [action_num, hidden]
    # b2_ref : [action_num, 1]
    # out_ref: [action_num, tile_b]  (batch on lanes -> lane-dense store)
    x = x_ref[...]

    # fc1 + ReLU: contract both state_dim axes -> h has shape [hidden, tile_b].
    # (MXU handles the transposed operand natively; no in-kernel transpose.)
    h = lax.dot_general(
        w1_ref[...], x,
        dimension_numbers=(((1,), (1,)), ((), ())),
        preferred_element_type=jnp.float32,
    ) + b1_ref[...]
    h = jnp.maximum(h, 0.0)

    # fc2: logits = W2 @ h + b2  -> [action_num, tile_b]
    logits = jnp.dot(w2_ref[...], h, preferred_element_type=jnp.float32) + b2_ref[...]

    # Softmax over the action axis (axis=0 here == dim=1 of the [B, A] output).
    # Exact normalization so rows sum to 1 to float32 precision.
    m = jnp.max(logits, axis=0, keepdims=True)
    e = jnp.exp(logits - m)
    denom = jnp.sum(e, axis=0, keepdims=True)
    out_ref[...] = (e / denom).astype(out_ref.dtype)


def _round_up(n, m):
    return ((n + m - 1) // m) * m


def _choose_tile_b(batch, max_tile):
    """Pick tile_b as a multiple of 128 that divides round_up(batch, 128),
    so padding never exceeds 127 rows regardless of tile size."""
    b_pad = _round_up(batch, 128)
    n128 = b_pad // 128
    max_k = max(1, min(n128, max_tile // 128))
    for k in range(max_k, 0, -1):
        if n128 % k == 0:
            return 128 * k, b_pad
    return 128, b_pad


def policy_net_forward(x, w1, b1, w2, b2, *, max_tile_b=2048):
    """x: [B, state_dim] (PyTorch layout). Weights in PyTorch nn.Linear layout:
    w1: [hidden, state_dim], b1: [hidden], w2: [action_num, hidden],
    b2: [action_num]. Returns softmax probabilities [B, action_num] (float32)."""
    B, state_dim = x.shape
    hidden = w1.shape[0]
    action_num = w2.shape[0]

    tile_b, B_pad = _choose_tile_b(B, max_tile_b)
    if B_pad != B:
        x = jnp.pad(x, ((0, B_pad - B), (0, 0)))  # at most 127 padded rows

    b1c = b1.reshape(hidden, 1).astype(jnp.float32)
    b2c = b2.reshape(action_num, 1).astype(jnp.float32)

    grid = (B_pad // tile_b,)
    probs_t = pl.pallas_call(
        policy_net_kernel,
        out_shape=jax.ShapeDtypeStruct((action_num, B_pad), jnp.float32),
        grid=grid,
        in_specs=[
            # Streamed activations in native layout: one batch tile per grid step.
            pl.BlockSpec((tile_b, state_dim), lambda i: (i, 0)),
            # Weights / biases: constant index_map -> DMA'd once, VMEM-resident.
            pl.BlockSpec((hidden, state_dim), lambda i: (0, 0)),
            pl.BlockSpec((hidden, 1), lambda i: (0, 0)),
            pl.BlockSpec((action_num, hidden), lambda i: (0, 0)),
            pl.BlockSpec((action_num, 1), lambda i: (0, 0)),
        ],
        out_specs=pl.BlockSpec((action_num, tile_b), lambda i: (0, i)),
        compiler_params=pltpu.CompilerParams(
            dimension_semantics=("parallel",)),
    )(x, w1, b1c, w2, b2c)

    # PyTorch output layout [B, action_num]. (If the consumer can take
    # [action_num, B] or a fused argmax/sample, this transpose can be dropped.)
    return probs_t[:, :B].T


def init_params(key, state_dim, action_num, hidden_dim):
    # Deterministic init mimicking nn.Linear's U(-1/sqrt(fan_in), 1/sqrt(fan_in)),
    # stored in PyTorch-native [out_features, in_features] layout.
    k1, k2, k3, k4 = jax.random.split(key, 4)
    lim1 = 1.0 / jnp.sqrt(state_dim)
    lim2 = 1.0 / jnp.sqrt(hidden_dim)
    w1 = jax.random.uniform(k1, (hidden_dim, state_dim), jnp.float32, -lim1, lim1)
    b1 = jax.random.uniform(k2, (hidden_dim,), jnp.float32, -lim1, lim1)
    w2 = jax.random.uniform(k3, (action_num, hidden_dim), jnp.float32, -lim2, lim2)
    b2 = jax.random.uniform(k4, (action_num,), jnp.float32, -lim2, lim2)
    return w1, b1, w2, b2


if __name__ == "__main__":
    state_dim, action_num, hidden_dim = 16, 4, 32
    # Batch many policy evaluations per pallas_call (stacked envs / timesteps);
    # 256 is a multiple of 128 so no padding pass is needed.
    batch = 256

    key = jax.random.PRNGKey(0)
    kx, kp = jax.random.split(key)
    x = jax.random.normal(kx, (batch, state_dim), jnp.float32)
    w1, b1, w2, b2 = init_params(kp, state_dim, action_num, hidden_dim)

    probs = policy_net_forward(x, w1, b1, w2, b2)
    probs = jax.block_until_ready(probs)

    # Pure-JAX reference of the same forward pass (PyTorch semantics).
    h_ref = jnp.maximum(x @ w1.T + b1, 0.0)
    ref = jax.nn.softmax(h_ref @ w2.T + b2, axis=1)

    assert probs.shape == (batch, action_num)
    assert jnp.allclose(probs, ref, atol=1e-4, rtol=1e-4)
    # Exact normalization in the kernel -> rows sum to 1 to f32 precision.
    assert jnp.allclose(jnp.sum(probs, axis=1), 1.0, atol=1e-4)

    print("KERNEL_OK")
</pallas_src>

<mosaic_0001>
module attributes {stable_mosaic.version = 11 : i64} {
  func.func @policy_net_kernel(%arg0: i32, %arg1: memref<256x16xf32, #tpu.memory_space<vmem>>, %arg2: memref<32x16xf32, #tpu.memory_space<vmem>>, %arg3: memref<32x1xf32, #tpu.memory_space<vmem>>, %arg4: memref<4x32xf32, #tpu.memory_space<vmem>>, %arg5: memref<4x1xf32, #tpu.memory_space<vmem>>, %arg6: memref<4x256xf32, #tpu.memory_space<vmem>>) attributes {dimension_semantics = [#tpu.dimension_semantics<parallel>], iteration_bounds = array<i64: 1>, scalar_prefetch = 0 : i64, scratch_operands = 0 : i64, tpu.core_type = #tpu.core_type<tc>, window_params = [{transform_indices = @transform_0, window_bounds = array<i64: 256, 16>}, {pipeline_mode = #tpu.pipeline_mode<synchronous>, transform_indices = @transform_1, window_bounds = array<i64: 32, 16>}, {pipeline_mode = #tpu.pipeline_mode<synchronous>, transform_indices = @transform_2, window_bounds = array<i64: 32, 1>}, {pipeline_mode = #tpu.pipeline_mode<synchronous>, transform_indices = @transform_3, window_bounds = array<i64: 4, 32>}, {pipeline_mode = #tpu.pipeline_mode<synchronous>, transform_indices = @transform_4, window_bounds = array<i64: 4, 1>}, {transform_indices = @transform_5, window_bounds = array<i64: 4, 256>}]} {
    %c0 = arith.constant 0 : index
    %c0_0 = arith.constant 0 : index
    %0 = vector.load %arg1[%c0, %c0_0] : memref<256x16xf32, #tpu.memory_space<vmem>>, vector<256x16xf32>
    %c0_1 = arith.constant 0 : index
    %c0_2 = arith.constant 0 : index
    %1 = vector.load %arg2[%c0_1, %c0_2] : memref<32x16xf32, #tpu.memory_space<vmem>>, vector<32x16xf32>
    %cst = arith.constant dense<0.000000e+00> : vector<32x256xf32>
    %2 = tpu.matmul %1, %0, %cst {dimension_numbers = #tpu.dot_dimension_numbers<[1], [1], [0], [0], [0, 0, 1, 0], [], []>} : vector<32x16xf32>, vector<256x16xf32>, vector<32x256xf32> -> vector<32x256xf32>
    %c0_3 = arith.constant 0 : index
    %c0_4 = arith.constant 0 : index
    %3 = vector.load %arg3[%c0_3, %c0_4] : memref<32x1xf32, #tpu.memory_space<vmem>>, vector<32x1xf32>
    %4 = vector.broadcast %3 : vector<32x1xf32> to vector<32x256xf32>
    %5 = arith.addf %2, %4 : vector<32x256xf32>
    %cst_5 = arith.constant 0.000000e+00 : f32
    %6 = vector.broadcast %cst_5 : f32 to vector<32x256xf32>
    %7 = arith.maximumf %5, %6 : vector<32x256xf32>
    %c0_6 = arith.constant 0 : index
    %c0_7 = arith.constant 0 : index
    %8 = vector.load %arg4[%c0_6, %c0_7] : memref<4x32xf32, #tpu.memory_space<vmem>>, vector<4x32xf32>
    %cst_8 = arith.constant dense<0.000000e+00> : vector<4x256xf32>
    %9 = tpu.matmul %8, %7, %cst_8 {dimension_numbers = #tpu.dot_dimension_numbers<[1], [0], [0], [1], [0, 0, 1, 1], [], []>} : vector<4x32xf32>, vector<32x256xf32>, vector<4x256xf32> -> vector<4x256xf32>
    %c0_9 = arith.constant 0 : index
    %c0_10 = arith.constant 0 : index
    %10 = vector.load %arg5[%c0_9, %c0_10] : memref<4x1xf32, #tpu.memory_space<vmem>>, vector<4x1xf32>
    %11 = vector.broadcast %10 : vector<4x1xf32> to vector<4x256xf32>
    %12 = arith.addf %9, %11 : vector<4x256xf32>
    %cst_11 = arith.constant dense<0xFF800000> : vector<256xf32>
    %13 = vector.multi_reduction <maximumf>, %12, %cst_11 [0] : vector<4x256xf32> to vector<256xf32>
    %14 = vector.shape_cast %13 : vector<256xf32> to vector<1x256xf32>
    %15 = vector.broadcast %14 : vector<1x256xf32> to vector<4x256xf32>
    %16 = arith.subf %12, %15 : vector<4x256xf32>
    %17 = math.exp %16 : vector<4x256xf32>
    %cst_12 = arith.constant dense<0.000000e+00> : vector<256xf32>
    %18 = vector.multi_reduction <add>, %17, %cst_12 [0] : vector<4x256xf32> to vector<256xf32>
    %19 = vector.shape_cast %18 : vector<256xf32> to vector<1x256xf32>
    %20 = vector.broadcast %19 : vector<1x256xf32> to vector<4x256xf32>
    %21 = arith.divf %17, %20 : vector<4x256xf32>
    %c0_13 = arith.constant 0 : index
    %c0_14 = arith.constant 0 : index
    %22 = vector.load %arg6[%c0_13, %c0_14] : memref<4x256xf32, #tpu.memory_space<vmem>>, vector<4x256xf32>
    tpu.vector_store %arg6[%c0_13, %c0_14], %21 {strides = array<i32>} : memref<4x256xf32, #tpu.memory_space<vmem>>, vector<4x256xf32>,
    return
  }
  func.func @transform_0(%arg0: i32) -> (i32, i32) {
    %c0_i32 = arith.constant 0 : i32
    %c0_i32_0 = arith.constant 0 : i32
    return %arg0, %c0_i32 : i32, i32
  }
  func.func @transform_1(%arg0: i32) -> (i32, i32) {
    %c0_i32 = arith.constant 0 : i32
    %c0_i32_0 = arith.constant 0 : i32
    %c0_i32_1 = arith.constant 0 : i32
    return %c0_i32, %c0_i32_0 : i32, i32
  }
  func.func @transform_2(%arg0: i32) -> (i32, i32) {
    %c0_i32 = arith.constant 0 : i32
    %c0_i32_0 = arith.constant 0 : i32
    %c0_i32_1 = arith.constant 0 : i32
    return %c0_i32, %c0_i32_0 : i32, i32
  }
  func.func @transform_3(%arg0: i32) -> (i32, i32) {
    %c0_i32 = arith.constant 0 : i32
    %c0_i32_0 = arith.constant 0 : i32
    %c0_i32_1 = arith.constant 0 : i32
    return %c0_i32, %c0_i32_0 : i32, i32
  }
  func.func @transform_4(%arg0: i32) -> (i32, i32) {
    %c0_i32 = arith.constant 0 : i32
    %c0_i32_0 = arith.constant 0 : i32
    %c0_i32_1 = arith.constant 0 : i32
    return %c0_i32, %c0_i32_0 : i32, i32
  }
  func.func @transform_5(%arg0: i32) -> (i32, i32) {
    %c0_i32 = arith.constant 0 : i32
    %c0_i32_0 = arith.constant 0 : i32
    return %c0_i32, %arg0 : i32, i32
  }
}

</mosaic_0001>

<llo_original>
// kernel: tpu_custom_call.1
$region0: #{tpu_custom_call.1}
  #allocation0 [shape = 'u32[]', space=smem, size = 0x4, offset = 0x4, fixed_abs, tag = 'smem constant byte address 0x4 - core index']
  #allocation1 [shape = 'u32[72,128]{1,0:T(1,128)}', space=vmem, size = 0x9000, scoped, tag = 'internal scratch']
  %s0 = inlined_call_operand.vmem [shape: f32[256,16], index: 0, kind: input, shape index: {}]
  %s1 = inlined_call_operand.vmem [shape: f32[32,16], index: 1, kind: input, shape index: {}]
  %s2 = inlined_call_operand.vmem [shape: f32[32,1], index: 2, kind: input, shape index: {}]
  %s3 = inlined_call_operand.vmem [shape: f32[4,32], index: 3, kind: input, shape index: {}]
  %s4 = inlined_call_operand.vmem [shape: f32[4,1], index: 4, kind: input, shape index: {}]
  %s5 = inlined_call_operand.hbm [shape: f32[4,256], index: 5, kind: output, shape index: {}]
  %s6 = sld [smem:[#allocation0]]
  $region30: #{tpu_custom_call.1} parent=0
    _
  %s8 = ssub.s32 1, %s6
  %s9 = scalar_select 0, %s8, %s6
  $region1: #{tpu_custom_call.1} parent=0
    #allocation2 [shape = 'u8[4096]{0}', space=vmem, size = 0x1000, scoped, tag = 'output window, operand 0, single buffered']
    #allocation3 [shape = 's32[1]{0}', space=sflag, size = 0x4, scoped, tag = 'scoped memory for tpu_custom_call.1']
    %10 = vsyncpa [#allocation3], 0
    // Predicated region
    $region2: #{tpu_custom_call.1} parent=1 // pred_check
      _
    $region3: #{tpu_custom_call.1} parent=1 // pred_check_branch
      %12 = sbr.rel (0) target = $region5
    $region4: #{tpu_custom_call.1} parent=1 // pred_region
      _
    $region5: #{tpu_custom_call.1} parent=1 // pred_fallthru
      _
    // Predicated region
    $region6: #{tpu_custom_call.1} parent=1 // pred_check
      _
    $region7: #{tpu_custom_call.1} parent=1 // pred_check_branch
      %14 = sbr.rel (0) target = $region9
    $region8: #{tpu_custom_call.1} parent=1 // pred_region
      _
    $region9: #{tpu_custom_call.1} parent=1 // pred_fallthru
      _
    // Predicated region
    $region10: #{tpu_custom_call.1} parent=1 // pred_check
      _
    $region11: #{tpu_custom_call.1} parent=1 // pred_check_branch
      %16 = sbr.rel (0) target = $region13
    $region12: #{tpu_custom_call.1} parent=1 // pred_region
      _
    $region13: #{tpu_custom_call.1} parent=1 // pred_fallthru
      _
    // Predicated region
    $region14: #{tpu_custom_call.1} parent=1 // pred_check
      _
    $region15: #{tpu_custom_call.1} parent=1 // pred_check_branch
      %18 = sbr.rel (0) target = $region17
    $region16: #{tpu_custom_call.1} parent=1 // pred_region
      _
    $region17: #{tpu_custom_call.1} parent=1 // pred_fallthru
      _
    // Predicated region
    $region18: #{tpu_custom_call.1} parent=1 // pred_check
      _
    $region19: #{tpu_custom_call.1} parent=1 // pred_check_branch
      %20 = sbr.rel (0) target = $region21
    $region20: #{tpu_custom_call.1} parent=1 // pred_region
      _
    $region21: #{tpu_custom_call.1} parent=1 // pred_fallthru
      _
    %v21 = vld [vmem:[%s0] sm:$0xff]
    %v22 = vld [vmem:[%s0 + $0x8] sm:$0xff]
    %v23 = vld [vmem:[%s0 + $0x10] sm:$0xff]
    %v24 = vld [vmem:[%s0 + $0x18] sm:$0xff]
    %v25 = vld [vmem:[%s0 + $0x20] sm:$0xff]
    %v26 = vld [vmem:[%s0 + $0x28] sm:$0xff]
    %v27 = vld [vmem:[%s0 + $0x30] sm:$0xff]
    %v28 = vld [vmem:[%s0 + $0x38] sm:$0xff]
    %v29 = vld [vmem:[%s0 + $0x40] sm:$0xff]
    %v30 = vld [vmem:[%s0 + $0x48] sm:$0xff]
    %v31 = vld [vmem:[%s0 + $0x50] sm:$0xff]
    %v32 = vld [vmem:[%s0 + $0x58] sm:$0xff]
    %v33 = vld [vmem:[%s0 + $0x60] sm:$0xff]
    %v34 = vld [vmem:[%s0 + $0x68] sm:$0xff]
    %v35 = vld [vmem:[%s0 + $0x70] sm:$0xff]
    %v36 = vld [vmem:[%s0 + $0x78] sm:$0xff]
    %v37 = vld [vmem:[%s0 + $0x80] sm:$0xff]
    %v38 = vld [vmem:[%s0 + $0x88] sm:$0xff]
    %v39 = vld [vmem:[%s0 + $0x90] sm:$0xff]
    %v40 = vld [vmem:[%s0 + $0x98] sm:$0xff]
    %v41 = vld [vmem:[%s0 + $0xa0] sm:$0xff]
    %v42 = vld [vmem:[%s0 + $0xa8] sm:$0xff]
    %v43 = vld [vmem:[%s0 + $0xb0] sm:$0xff]
    %v44 = vld [vmem:[%s0 + $0xb8] sm:$0xff]
    %v45 = vld [vmem:[%s0 + $0xc0] sm:$0xff]
    %v46 = vld [vmem:[%s0 + $0xc8] sm:$0xff]
    %v47 = vld [vmem:[%s0 + $0xd0] sm:$0xff]
    %v48 = vld [vmem:[%s0 + $0xd8] sm:$0xff]
    %v49 = vld [vmem:[%s0 + $0xe0] sm:$0xff]
    %v50 = vld [vmem:[%s0 + $0xe8] sm:$0xff]
    %v51 = vld [vmem:[%s0 + $0xf0] sm:$0xff]
    %v52 = vld [vmem:[%s0 + $0xf8] sm:$0xff]
    %v53 = vld [vmem:[%s1] sm:$0xff]
    %v54 = vld [vmem:[%s1 + $0x8] sm:$0xff]
    %v55 = vld [vmem:[%s1 + $0x10] sm:$0xff]
    %v56 = vld [vmem:[%s1 + $0x18] sm:$0xff]
    %v57 = vld [vmem:[%s2] sm:$0xff]
    %v58 = vld [vmem:[%s2 + $0x8] sm:$0xff]
    %v59 = vld [vmem:[%s2 + $0x10] sm:$0xff]
    %v60 = vld [vmem:[%s2 + $0x18] sm:$0xff]
    %62 = vset.pattern.permute.xlu0 0
    %63 = vperm.xlu0 %62, %v57
    %v64 = vpop.permute.xlu0 %63
    %67 = vset.pattern.permute.xlu0 0
    %68 = vperm.xlu0 %67, %v58
    %v69 = vpop.permute.xlu0 %68
    %72 = vset.pattern.permute.xlu0 0
    %73 = vperm.xlu0 %72, %v59
    %v74 = vpop.permute.xlu0 %73
    %77 = vset.pattern.permute.xlu0 0
    %78 = vperm.xlu0 %77, %v60
    %v79 = vpop.permute.xlu0 %78
    %vm81 = vcmask 130048
    %v83 = vsel %vm81, %v53, 0
    %v86 = vsel %vm81, %v54, 0
    %v89 = vsel %vm81, %v55, 0
    %v92 = vsel %vm81, %v56, 0
    %v95 = vsel %vm81, %v21, 0
    %v98 = vsel %vm81, %v22, 0
    %v101 = vsel %vm81, %v23, 0
    %v104 = vsel %vm81, %v24, 0
    %v107 = vsel %vm81, %v25, 0
    %v110 = vsel %vm81, %v26, 0
    %v113 = vsel %vm81, %v27, 0
    %v116 = vsel %vm81, %v28, 0
    %v119 = vsel %vm81, %v29, 0
    %v122 = vsel %vm81, %v30, 0
    %v125 = vsel %vm81, %v31, 0
    %v128 = vsel %vm81, %v32, 0
    %v131 = vsel %vm81, %v33, 0
    %v134 = vsel %vm81, %v34, 0
    %v137 = vsel %vm81, %v35, 0
    %v140 = vsel %vm81, %v36, 0
    %v143 = vsel %vm81, %v37, 0
    %v146 = vsel %vm81, %v38, 0
    %v149 = vsel %vm81, %v39, 0
    %v152 = vsel %vm81, %v40, 0
    %v155 = vsel %vm81, %v41, 0
    %v158 = vsel %vm81, %v42, 0
    %v161 = vsel %vm81, %v43, 0
    %v164 = vsel %vm81, %v44, 0
    %v167 = vsel %vm81, %v45, 0
    %v170 = vsel %vm81, %v46, 0
    %v173 = vsel %vm81, %v47, 0
    %v176 = vsel %vm81, %v48, 0
    %v179 = vsel %vm81, %v49, 0
    %v182 = vsel %vm81, %v50, 0
    %v185 = vsel %vm81, %v51, 0
    %v188 = vsel %vm81, %v52, 0
    %190 = vmatpush.xpose.msra.mxu0 %v140
    %191 = vmatpush.xpose.msra.mxu0 %v137
    %192 = vmatpush.xpose.msra.mxu0 %v134
    %193 = vmatpush.xpose.msra.mxu0 %v131
    %194 = vmatpush.xpose.msra.mxu0 %v128
    %195 = vmatpush.xpose.msra.mxu0 %v125
    %196 = vmatpush.xpose.msra.mxu0 %v122
    %197 = vmatpush.xpose.msra.mxu0 %v119
    %198 = vmatpush.xpose.msra.mxu0 %v116
    %199 = vmatpush.xpose.msra.mxu0 %v113
    %200 = vmatpush.xpose.msra.mxu0 %v110
    %201 = vmatpush.xpose.msra.mxu0 %v107
    %202 = vmatpush.xpose.msra.mxu0 %v104
    %203 = vmatpush.xpose.msra.mxu0 %v101
    %204 = vmatpush.xpose.msra.mxu0 %v98
    %205 = vmatpush.xpose.msra.mxu0 %v95
    %206 = vmatmul.f32.gmra.mxu0 %v83
    %v207 = vpop.f32.mrf.mxu0
    %v208 = vadd.f32 %v64, %v207
    %209 = vmatmul.f32.gmra.mxu0 %v86
    %v210 = vpop.f32.mrf.mxu0
    %v211 = vadd.f32 %v69, %v210
    %212 = vmatmul.f32.gmra.mxu0 %v89
    %v213 = vpop.f32.mrf.mxu0
    %v214 = vadd.f32 %v74, %v213
    %215 = vmatmul.f32.gmra.mxu0 %v92
    %v216 = vpop.f32.mrf.mxu0
    %v217 = vadd.f32 %v79, %v216
    %218 = vdwg.mxu0
    %219 = vmatpush.xpose.msra.mxu0 %v188
    %220 = vmatpush.xpose.msra.mxu0 %v185
    %221 = vmatpush.xpose.msra.mxu0 %v182
    %222 = vmatpush.xpose.msra.mxu0 %v179
    %223 = vmatpush.xpose.msra.mxu0 %v176
    %224 = vmatpush.xpose.msra.mxu0 %v173
    %225 = vmatpush.xpose.msra.mxu0 %v170
    %226 = vmatpush.xpose.msra.mxu0 %v167
    %227 = vmatpush.xpose.msra.mxu0 %v164
    %228 = vmatpush.xpose.msra.mxu0 %v161
    %229 = vmatpush.xpose.msra.mxu0 %v158
    %230 = vmatpush.xpose.msra.mxu0 %v155
    %231 = vmatpush.xpose.msra.mxu0 %v152
    %232 = vmatpush.xpose.msra.mxu0 %v149
    %233 = vmatpush.xpose.msra.mxu0 %v146
    %234 = vmatpush.xpose.msra.mxu0 %v143
    %235 = vmatmul.f32.gmra.mxu0 %v83
    %v236 = vpop.f32.mrf.mxu0
    %v237 = vadd.f32 %v64, %v236
    %238 = vmatmul.f32.gmra.mxu0 %v86
    %v239 = vpop.f32.mrf.mxu0
    %v240 = vadd.f32 %v69, %v239
    %241 = vmatmul.f32.gmra.mxu0 %v89
    %v242 = vpop.f32.mrf.mxu0
    %v243 = vadd.f32 %v74, %v242
    %244 = vmatmul.f32.gmra.mxu0 %v92
    %v245 = vpop.f32.mrf.mxu0
    %v246 = vadd.f32 %v79, %v245
    %247 = vdwg.mxu0
    %v248 = vmax.f32 %v208, 0.0
    %v249 = vmax.f32 %v237, 0.0
    %v250 = vmax.f32 %v211, 0.0
    %v251 = vmax.f32 %v240, 0.0
    %v252 = vmax.f32 %v214, 0.0
    %v253 = vmax.f32 %v243, 0.0
    %v254 = vmax.f32 %v217, 0.0
    %v255 = vmax.f32 %v246, 0.0
    %v256 = vld [vmem:[%s3] sm:$0xf]
    %v257 = vld [vmem:[%s4] sm:$0xf]
    %259 = vset.pattern.permute.xlu0 0
    %260 = vperm.xlu0 %259, %v257
    %v261 = vpop.permute.xlu0 %260
    %vm263 = vcmask 261120
    %v265 = vsel %vm263, %v256, 0
    %267 = vmatpush.msra.mxu0 0.0
    %268 = vmatpush.msra.mxu0 0.0
    %269 = vmatpush.msra.mxu0 0.0
    %270 = vmatpush.msra.mxu0 0.0
    %271 = vmatpush.msra.mxu0 0.0
    %272 = vmatpush.msra.mxu0 0.0
    %273 = vmatpush.msra.mxu0 0.0
    %274 = vmatpush.msra.mxu0 0.0
    %275 = vmatpush.msra.mxu0 0.0
    %276 = vmatpush.msra.mxu0 0.0
    %277 = vmatpush.msra.mxu0 0.0
    %278 = vmatpush.msra.mxu0 0.0
    %279 = vmatpush.msra.mxu0 %v254
    %280 = vmatpush.msra.mxu0 %v252
    %281 = vmatpush.msra.mxu0 %v250
    %282 = vmatpush.msra.mxu0 %v248
    %283 = vmatmul.f32.gmra.mxu0 %v265
    %v284 = vpop.f32.mrf.mxu0
    %v285 = vadd.f32 %v261, %v284
    %286 = vdwg.mxu0
    %287 = vmatpush.msra.mxu0 0.0
    %288 = vmatpush.msra.mxu0 0.0
    %289 = vmatpush.msra.mxu0 0.0
    %290 = vmatpush.msra.mxu0 0.0
    %291 = vmatpush.msra.mxu0 0.0
    %292 = vmatpush.msra.mxu0 0.0
    %293 = vmatpush.msra.mxu0 0.0
    %294 = vmatpush.msra.mxu0 0.0
    %295 = vmatpush.msra.mxu0 0.0
    %296 = vmatpush.msra.mxu0 0.0
    %297 = vmatpush.msra.mxu0 0.0
    %298 = vmatpush.msra.mxu0 0.0
    %299 = vmatpush.msra.mxu0 %v255
    %300 = vmatpush.msra.mxu0 %v253
    %301 = vmatpush.msra.mxu0 %v251
    %302 = vmatpush.msra.mxu0 %v249
    %303 = vmatmul.f32.gmra.mxu0 %v265
    %v304 = vpop.f32.mrf.mxu0
    %v305 = vadd.f32 %v261, %v304
    %306 = vdwg.mxu0
    %vm307 = vcmask 1043456
    %v308 = vsel %vm307, %v285, -inf
    %v309 = vrot.slane %v308, 4
    %v310 = vmax.f32 %v308, %v309
    %v311 = vrot.slane %v310, 2
    %v312 = vmax.f32 %v310, %v311
    %v313 = vrot.slane %v312, 1
    %v314 = vmax.f32 %v312, %v313
    %v315 = vsel %vm307, %v305, -inf
    %v316 = vrot.slane %v315, 4
    %v317 = vmax.f32 %v315, %v316
    %v318 = vrot.slane %v317, 2
    %v319 = vmax.f32 %v317, %v318
    %v320 = vrot.slane %v319, 1
    %v321 = vmax.f32 %v319, %v320
    %v322 = vsub.f32 %v285, %v314
    %v323 = vsub.f32 %v305, %v321
    %v324 = vmul.f32 %v322, 1.442695
    %v325 = vpow.pop %v324
    %v326 = vmul.f32 %v323, 1.442695
    %v327 = vpow.pop %v326
    %v328 = vsel %vm307, %v325, 0.0
    %v329 = vrot.slane %v328, 4
    %v330 = vadd.f32 %v328, %v329
    %v331 = vrot.slane %v330, 2
    %v332 = vadd.f32 %v330, %v331
    %v333 = vrot.slane %v332, 1
    %v334 = vadd.f32 %v332, %v333
    %v335 = vsel %vm307, %v327, 0.0
    %v336 = vrot.slane %v335, 4
    %v337 = vadd.f32 %v335, %v336
    %v338 = vrot.slane %v337, 2
    %v339 = vadd.f32 %v337, %v338
    %v340 = vrot.slane %v339, 1
    %v341 = vadd.f32 %v339, %v340
    %v342 = vrcp.pop %v334
    %v343 = vmul.f32 %v334, %v342
    %v344 = vsub.f32 1.0, %v343
    %v345 = vmul.f32 %v342, %v344
    %v346 = vadd.f32 %v342, %v345
    %vm347 = vweird.f32 %v334
    %vm348 = vweird.f32 %v342
    %vm349 = vmor %vm347, %vm348
    %v350 = vsel %vm349, %v342, %v346
    %v351 = vand.u32 2147483647, %v334
    %vm352 = vcmp.eq.f32.partialorder %v351, 8.507059e+37
    %v353 = vand.u32 %v334, 2147483648
    %v354 = vor.u32 1.1754944e-38, %v353
    %v355 = vsel %vm352, %v354, %v350
    %v356 = vmul.f32 %v325, %v355
    %v357 = vrcp.pop %v341
    %v358 = vmul.f32 %v341, %v357
    %v359 = vsub.f32 1.0, %v358
    %v360 = vmul.f32 %v357, %v359
    %v361 = vadd.f32 %v357, %v360
    %vm362 = vweird.f32 %v341
    %vm363 = vweird.f32 %v357
    %vm364 = vmor %vm362, %vm363
    %v365 = vsel %vm364, %v357, %v361
    %v366 = vand.u32 2147483647, %v341
    %vm367 = vcmp.eq.f32.partialorder %v366, 8.507059e+37
    %v368 = vand.u32 %v341, 2147483648
    %v369 = vor.u32 1.1754944e-38, %v368
    %v370 = vsel %vm367, %v369, %v365
    %v371 = vmul.f32 %v327, %v370
    %v374 = vrot.slane %v371, 4
    %v375 = vsel %vm307, %v356, %v374
    %377 = vst [vmem:[#allocation2] sm:$0xff] %v375
    // Predicated region
    $region22: #{tpu_custom_call.1} parent=1 // pred_check
      _
    $region23: #{tpu_custom_call.1} parent=1 // pred_check_branch
      %379 = sbr.rel (0) target = $region25
    $region24: #{tpu_custom_call.1} parent=1 // pred_region
      %381 = vsyncadd [#allocation3], 0
      %s383 = sshll.u32 [#allocation2], 4
      %s384 = int_to_ptr.vmem [resolvable:$true] %s383
      %s385 = sshll.u32 %s5, 4
      %s386 = int_to_ptr.hbm [resolvable:$true] %s385
      %388 = dma.vmem_to_hbm [thread:$0]  %s384, 128, %s386, [#allocation3]
    $region25: #{tpu_custom_call.1} parent=1 // pred_fallthru
      _
    // Predicated region
    $region26: #{tpu_custom_call.1} parent=1 // pred_check
      _
    $region27: #{tpu_custom_call.1} parent=1 // pred_check_branch
      %390 = sbr.rel (0) target = $region29
    $region28: #{tpu_custom_call.1} parent=1 // pred_region
      %392 = dma.done [#allocation3], 128
    $region29: #{tpu_custom_call.1} parent=1 // pred_fallthru
      _
    %393 = vsyncpa [#allocation3], 1

</llo_original>
